<compile_context>
chip_gen: v7x
topology: tpu7x:2x2x1
jax: 0.10.0
libtpu: 0.0.40
codegen_flags: <defaults>
</compile_context>

<pallas_src>
import functools

import jax
import jax.numpy as jnp
from jax import lax
from jax.experimental import pallas as pl
from jax.experimental.pallas import tpu as pltpu

_EPS = 1e-12        # matches torch.nn.functional.normalize default eps
_NEG_BIG = -1e30    # finite "minus infinity" for masked logits / LSE init
_ROW = 16           # row granularity (native bf16 sublane tile)


def _round_up(x, m):
    return ((x + m - 1) // m) * m


def _ceil_div(a, b):
    return -(-a // b)


def _tpu_vmem_capacity_bytes():
    try:
        return int(pltpu.get_tpu_info().vmem_capacity_bytes)
    except Exception:
        return 64 << 20      # conservative (v7x-sized) fallback


# ----------------------------------------------------------------------------
# Prepass kernels: normalize (+ 1/tau fold + positive logit), pad, cast bf16
# ----------------------------------------------------------------------------
def _store_row_padded(ref, val, d, dp):
    """Write (rows, d) `val` into a (rows, dp) ref, zeroing padded columns."""
    if d == dp:
        ref[...] = val
    else:
        ref[:, :d] = val
        ref[:, d:] = jnp.zeros((val.shape[0], dp - d), val.dtype)


def _query_prep_kernel(q_ref, p_ref, *out_refs, inv_tau, d, dp, emit_pn):
    """Fused prepass: reads q / positive_key exactly once."""
    if emit_pn:
        qn_ref, pn_ref, pos_ref = out_refs
    else:
        qn_ref, pos_ref = out_refs
        pn_ref = None
    q = q_ref[...].astype(jnp.float32)
    p = p_ref[...].astype(jnp.float32)
    # x * rsqrt(max(ssq, eps^2)) == x / max(||x||, eps)   (rsqrt -> EUP slot)
    qn = q * lax.rsqrt(jnp.maximum(jnp.sum(q * q, axis=-1, keepdims=True),
                                   _EPS * _EPS))
    pn = p * lax.rsqrt(jnp.maximum(jnp.sum(p * p, axis=-1, keepdims=True),
                                   _EPS * _EPS))
    # NOTE: 1/tau is folded in *before* the bf16 cast; changing the cast order
    # changes the rounding of every logit.
    qb = (qn * inv_tau).astype(jnp.bfloat16)
    pb = pn.astype(jnp.bfloat16)
    # Positive logit from the SAME bf16-rounded operands the MXU later sees.
    pos = jnp.sum(qb.astype(jnp.float32) * pb.astype(jnp.float32),
                  axis=-1, keepdims=True)
    pos_ref[...] = jnp.broadcast_to(pos, pos_ref.shape)
    _store_row_padded(qn_ref, qb, d, dp)
    if emit_pn:
        _store_row_padded(pn_ref, pb, d, dp)


def _key_prep_kernel(x_ref, o_ref, *, d, dp):
    x = x_ref[...].astype(jnp.float32)
    xn = x * lax.rsqrt(jnp.maximum(jnp.sum(x * x, axis=-1, keepdims=True),
                                   _EPS * _EPS))
    _store_row_padded(o_ref, xn.astype(jnp.bfloat16), d, dp)


# ----------------------------------------------------------------------------
# Main kernel: flash-style online LSE over key tiles
# ----------------------------------------------------------------------------
def _infonce_kernel(qn_ref, k_ref, pos_ref, o_ref, m_ref, l_ref,
                    *, include_pos, num_valid_keys, mask_keys):
    ki = pl.program_id(1)

    @pl.when(ki == 0)
    def _init():
        m_ref[...] = jnp.full_like(m_ref, _NEG_BIG)
        l_ref[...] = jnp.zeros_like(l_ref)

    # (tq, tk) logits tile: bf16 operands, f32 MXU accumulation; contraction on
    # the feature dim of both operands (no transposed key copy materialized).
    s = lax.dot_general(qn_ref[...], k_ref[...],
                        (((1,), (1,)), ((), ())),
                        preferred_element_type=jnp.float32)

    if mask_keys:
        tk = k_ref.shape[0]
        col = ki * tk + lax.broadcasted_iota(jnp.int32, (1, tk), 1)
        s = jnp.where(col < num_valid_keys, s, _NEG_BIG)

    # Online log-sum-exp update.
    m_prev = m_ref[...]
    m_new = jnp.maximum(m_prev, jnp.max(s, axis=-1, keepdims=True))
    l_ref[...] = (l_ref[...] * jnp.exp(m_prev - m_new)
                  + jnp.sum(jnp.exp(s - m_new), axis=-1, keepdims=True))
    m_ref[...] = m_new

    @pl.when(ki == pl.num_programs(1) - 1)
    def _finalize():
        pos = pos_ref[:, 0:1]
        m = m_ref[...]
        l = l_ref[...]
        if include_pos:
            # 'unpaired': the positive logit is an extra column of the logits.
            m_f = jnp.maximum(m, pos)
            l_f = l * jnp.exp(m - m_f) + jnp.exp(pos - m_f)
        else:
            # negative_keys is None: positive logit is already in the LSE (diag).
            m_f, l_f = m, l
        per_row = (m_f + jnp.log(l_f)) - pos       # (tq, 1) cross-entropy rows
        o_ref[...] = jnp.broadcast_to(per_row, o_ref.shape)


# ----------------------------------------------------------------------------
# VMEM budgeting / tile selection (generation-aware)
# ----------------------------------------------------------------------------
def _main_vmem_bytes(tq, tk, dp, key_bufs=2):
    return (2 * tq * dp * 2            # qn (bf16, double-buffered)
            + key_bufs * tk * dp * 2   # key tiles (bf16)
            + 2 * tq * 128 * 4         # positive logit input (f32)
            + 2 * tq * 128 * 4         # per-row loss output (f32)
            + 2 * tq * 128 * 4         # m/l scratch (lane-padded)
            + 2 * tq * tk * 4)         # logits + exp temporaries (f32)


def _prep_vmem_bytes(pt, d, dp, num_bf16_out):
    din = _round_up(max(d, 1), 128)
    return (2 * 2 * pt * din * 4               # f32 inputs (<=2), double-buffered
            + 2 * num_bf16_out * pt * dp * 2   # bf16 outputs, double-buffered
            + 2 * pt * 128 * 4                 # pos output
            + 3 * pt * dp * 4)                 # f32 temporaries


def _prep_tile_rows(rows, d, dp, num_bf16_out, budget):
    pt = min(_round_up(max(rows, 1), _ROW), 512)
    while pt > _ROW and _prep_vmem_bytes(pt, d, dp, num_bf16_out) > budget:
        pt = max(_ROW, _round_up(pt // 2, _ROW))
    return pt


# ----------------------------------------------------------------------------
# Wrapper
# ----------------------------------------------------------------------------
def info_nce(query, positive_key, negative_keys=None, temperature=1.0,
             reduction='mean', negative_mode='unpaired'):
    if query.ndim != 2:
        raise ValueError('<query> must have 2 dimensions.')
    if positive_key.ndim != 2:
        raise ValueError('<positive_key> must have 2 dimensions.')
    if negative_keys is not None:
        if negative_mode == 'unpaired' and negative_keys.ndim != 2:
            raise ValueError("<negative_keys> must have 2 dimensions if <negative_mode> == 'unpaired'.")
        if negative_mode == 'paired' and negative_keys.ndim != 3:
            raise ValueError("<negative_keys> must have 3 dimensions if <negative_mode> == 'paired'.")
    if query.shape[0] != positive_key.shape[0]:
        raise ValueError('<query> and <positive_key> must have the same number of samples.')
    if (negative_keys is not None and negative_mode == 'paired'
            and query.shape[0] != negative_keys.shape[0]):
        raise ValueError("If negative_mode == 'paired', then <negative_keys> must have the same number of samples as <query>.")
    if query.shape[-1] != positive_key.shape[-1]:
        raise ValueError('Vectors of <query> and <positive_key> should have the same number of components.')
    if negative_keys is not None and query.shape[-1] != negative_keys.shape[-1]:
        raise ValueError('Vectors of <query> and <negative_keys> should have the same number of components.')
    if negative_keys is not None and negative_mode == 'paired':
        # TODO(synk): negative_mode='paired' (per-row 3-D negatives) not implemented in-kernel.
        raise NotImplementedError("negative_mode='paired' is not implemented")

    n, d = query.shape
    inv_tau = 1.0 / float(temperature)
    self_mode = negative_keys is None

    dp = _round_up(max(d, 1), 128)                      # lane / contraction dim

    vmem_cap = _tpu_vmem_capacity_bytes()
    budget = (vmem_cap * 3) // 4                        # leave VMEM headroom
    two_core_hint = vmem_cap <= (64 << 20)              # v7x: 2 TCs, 64 MiB VMEM
    vmem_limit = int(budget)

    # ---- query-row tile (bigger tq => fewer key re-reads) -------------------
    tq_cap = 1024 if (budget >= (80 << 20) and not two_core_hint) else 512
    while tq_cap > 64 and _main_vmem_bytes(tq_cap, 256, dp) > budget:
        tq_cap //= 2
    nq_tiles = max(1, _ceil_div(n, tq_cap))
    if two_core_hint and n >= 16:
        nq_tiles = max(nq_tiles, 2)                     # keep both TCs busy
    tq = _round_up(_ceil_div(n, nq_tiles), _ROW)
    n_pad = _round_up(n, tq)
    num_q_tiles = n_pad // tq

    # ---- key-column tile (balanced to minimize padded-key work) -------------
    tk_cap = 1024 if budget >= (80 << 20) else 512
    while tk_cap > 128 and _main_vmem_bytes(tq, tk_cap, dp) > budget:
        tk_cap //= 2

    if self_mode:
        include_pos = False
        num_keys = n
        k_pad = n_pad
        cands = [c for c in (1024, 512, 256, 128) if c <= tk_cap and n_pad % c == 0]
        cands += [t for t in (tq, tq // 2, tq // 4)
                  if t >= _ROW and t % _ROW == 0 and n_pad % t == 0 and t <= tk_cap]
        tk = max(cands) if cands else tq
    else:
        include_pos = True
        num_keys = int(negative_keys.shape[0])
        nk_tiles = max(1, _ceil_div(num_keys, tk_cap))
        tk = min(_round_up(_ceil_div(num_keys, nk_tiles), 128),
                 _round_up(num_keys, 128), tk_cap)
        k_pad = _round_up(num_keys, tk)
    num_k_tiles = k_pad // tk
    mask_keys = (k_pad != num_keys)

    key_bufs = 3 if (num_k_tiles >= 3
                     and _main_vmem_bytes(tq, tk, dp, 3) <= budget) else 2

    # ---- prepass: q / positive_key (read once, fused) -----------------------
    pt = _prep_tile_rows(n, d, dp, 2 if self_mode else 1, budget)
    out_shapes = [jax.ShapeDtypeStruct((n_pad, dp), jnp.bfloat16)]
    out_specs = [pl.BlockSpec((pt, dp), lambda i: (i, 0))]
    if self_mode:
        out_shapes.append(jax.ShapeDtypeStruct((n_pad, dp), jnp.bfloat16))
        out_specs.append(pl.BlockSpec((pt, dp), lambda i: (i, 0)))
    out_shapes.append(jax.ShapeDtypeStruct((n_pad, 128), jnp.float32))
    out_specs.append(pl.BlockSpec((pt, 128), lambda i: (i, 0)))

    prep_outs = pl.pallas_call(
        functools.partial(_query_prep_kernel, inv_tau=inv_tau, d=d, dp=dp,
                          emit_pn=self_mode),
        out_shape=tuple(out_shapes),
        grid_spec=pltpu.PrefetchScalarGridSpec(
            num_scalar_prefetch=0,
            grid=(pl.cdiv(n, pt),),
            in_specs=[pl.BlockSpec((pt, d), lambda i: (i, 0)),
                      pl.BlockSpec((pt, d), lambda i: (i, 0))],
            out_specs=tuple(out_specs)),
        compiler_params=pltpu.CompilerParams(
            dimension_semantics=("parallel",),
            vmem_limit_bytes=vmem_limit),
    )(query, positive_key)
    if self_mode:
        qn, k_norm, pos = prep_outs
    else:
        qn, pos = prep_outs

    # ---- prepass: negative keys (unpaired mode only) -------------------------
    if not self_mode:
        pkt = _prep_tile_rows(num_keys, d, dp, 1, budget)
        k_norm = pl.pallas_call(
            functools.partial(_key_prep_kernel, d=d, dp=dp),
            out_shape=jax.ShapeDtypeStruct((k_pad, dp), jnp.bfloat16),
            grid_spec=pltpu.PrefetchScalarGridSpec(
                num_scalar_prefetch=0,
                grid=(pl.cdiv(num_keys, pkt),),
                in_specs=[pl.BlockSpec((pkt, d), lambda i: (i, 0))],
                out_specs=pl.BlockSpec((pkt, dp), lambda i: (i, 0))),
            compiler_params=pltpu.CompilerParams(
                dimension_semantics=("parallel",),
                vmem_limit_bytes=vmem_limit),
        )(negative_keys)

    # ---- main flash-style kernel ---------------------------------------------
    key_kwargs = {} if key_bufs == 2 else {"pipeline_mode": pl.Buffered(key_bufs)}
    key_spec = pl.BlockSpec((tk, dp), lambda qi, ki: (ki, 0), **key_kwargs)

    cost = pl.CostEstimate(
        flops=int(2 * n_pad * k_pad * dp),
        transcendentals=int(n_pad * k_pad + 8 * n_pad),
        bytes_accessed=int(n_pad * dp * 2 + num_q_tiles * k_pad * dp * 2
                           + 2 * n_pad * 128 * 4))

    kern = functools.partial(_infonce_kernel, include_pos=include_pos,
                             num_valid_keys=num_keys, mask_keys=mask_keys)

    out = pl.pallas_call(
        kern,
        out_shape=jax.ShapeDtypeStruct((n_pad, 128), jnp.float32),
        grid_spec=pltpu.PrefetchScalarGridSpec(
            num_scalar_prefetch=0,
            grid=(num_q_tiles, num_k_tiles),
            in_specs=[
                pl.BlockSpec((tq, dp), lambda qi, ki: (qi, 0)),    # qn (bf16, 1/tau folded)
                key_spec,                                          # normalized keys (bf16)
                pl.BlockSpec((tq, 128), lambda qi, ki: (qi, 0)),   # positive logit (f32)
            ],
            out_specs=pl.BlockSpec((tq, 128), lambda qi, ki: (qi, 0)),
            scratch_shapes=[pltpu.VMEM((tq, 1), jnp.float32),      # running max
                            pltpu.VMEM((tq, 1), jnp.float32)]),    # running sum
        compiler_params=pltpu.CompilerParams(
            dimension_semantics=("parallel", "arbitrary"),
            vmem_limit_bytes=vmem_limit),
        cost_estimate=cost,
    )(qn, k_norm, pos)

    per_row = out[:n, 0]
    if reduction == 'mean':
        return jnp.mean(per_row)
    elif reduction == 'sum':
        return jnp.sum(per_row)
    elif reduction == 'none':
        return per_row
    else:
        raise ValueError(f"unknown reduction {reduction!r}")


class Args:
    def __init__(self, tau):
        self.tau = tau


class InfoNCE:
    """Mirrors the PyTorch module: the only 'parameter' is args.tau."""

    def __init__(self, args, reduction='mean', negative_mode='unpaired'):
        self.args = args
        self.reduction = reduction
        self.negative_mode = negative_mode
        self.temperature = args.tau

    def __call__(self, query, positive_key, negative_keys=None):
        return info_nce(query, positive_key, negative_keys,
                        temperature=self.temperature,
                        reduction=self.reduction,
                        negative_mode=self.negative_mode)


# ----------------------------------------------------------------------------
# References (for silent sanity checks)
# ----------------------------------------------------------------------------
def _ref_f32(q, p, nk, tau):
    def norm(x):
        return x / jnp.maximum(jnp.sqrt(jnp.sum(x * x, -1, keepdims=True)), _EPS)
    q, p = norm(q), norm(p)
    if nk is None:
        logits = q @ p.T
        labels = jnp.arange(q.shape[0])
    else:
        nk = norm(nk)
        pos = jnp.sum(q * p, -1, keepdims=True)
        logits = jnp.concatenate([pos, q @ nk.T], axis=1)
        labels = jnp.zeros((q.shape[0],), dtype=jnp.int32)
    logp = jax.nn.log_softmax(logits / tau, axis=-1)
    return -jnp.mean(jnp.take_along_axis(logp, labels[:, None], axis=1))


def _ref_bf16(q, p, nk, tau):
    # Same math as the kernel: rsqrt normalize, 1/tau folded into q before the
    # bf16 cast, f32 accumulation of bf16-rounded operands.
    def norm_b(x, scale=1.0):
        ssq = jnp.sum(x * x, -1, keepdims=True)
        y = x * lax.rsqrt(jnp.maximum(ssq, _EPS * _EPS))
        return (y * scale).astype(jnp.bfloat16).astype(jnp.float32)
    qb, pb = norm_b(q, 1.0 / tau), norm_b(p)
    pos = jnp.sum(qb * pb, -1, keepdims=True)
    if nk is None:
        logits = qb @ pb.T
    else:
        logits = jnp.concatenate([pos, qb @ norm_b(nk).T], axis=1)
    lse = jax.scipy.special.logsumexp(logits, axis=-1, keepdims=True)
    return jnp.mean(lse - pos)


if __name__ == "__main__":
    key = jax.random.PRNGKey(0)
    kq, kp, kn, kq2, kp2, kq3, kp3, kn3 = jax.random.split(key, 8)

    module = InfoNCE(Args(tau=0.1))

    # Small primary shapes (hidden=32, batch=8, negatives=16).
    N, D, M = 8, 32, 16
    q = jax.random.normal(kq, (N, D), dtype=jnp.float32)
    p = jax.random.normal(kp, (N, D), dtype=jnp.float32)
    nk = jax.random.normal(kn, (M, D), dtype=jnp.float32)

    loss_self = jax.block_until_ready(module(q, p))
    loss_unp = jax.block_until_ready(module(q, p, nk))
    assert jnp.allclose(loss_self, _ref_bf16(q, p, None, 0.1), atol=2e-2, rtol=2e-2)
    assert jnp.allclose(loss_unp, _ref_bf16(q, p, nk, 0.1), atol=2e-2, rtol=2e-2)
    assert jnp.allclose(loss_self, _ref_f32(q, p, None, 0.1), atol=5e-2, rtol=5e-2)
    assert jnp.allclose(loss_unp, _ref_f32(q, p, nk, 0.1), atol=5e-2, rtol=5e-2)

    # 'none' reduction: per-sample losses, consistent with the mean.
    none_mod = InfoNCE(Args(tau=0.1), reduction='none')
    per_row = jax.block_until_ready(none_mod(q, p, nk))
    assert per_row.shape == (N,)
    assert jnp.allclose(jnp.mean(per_row), loss_unp, atol=1e-5, rtol=1e-5)

    # Ragged self case (exercises row padding + key-column masking + q tiling).
    N2, D2 = 300, 96
    q2 = jax.random.normal(kq2, (N2, D2), dtype=jnp.float32)
    p2 = jax.random.normal(kp2, (N2, D2), dtype=jnp.float32)
    loss2 = jax.block_until_ready(module(q2, p2))
    assert jnp.allclose(loss2, _ref_bf16(q2, p2, None, 0.1), atol=2e-2, rtol=2e-2)

    # Ragged unpaired case with several key tiles and padded feature dim.
    N3, D3, M3 = 40, 200, 1500
    q3 = jax.random.normal(kq3, (N3, D3), dtype=jnp.float32)
    p3 = jax.random.normal(kp3, (N3, D3), dtype=jnp.float32)
    nk3 = jax.random.normal(kn3, (M3, D3), dtype=jnp.float32)
    loss3 = jax.block_until_ready(module(q3, p3, nk3))
    assert jnp.allclose(loss3, _ref_bf16(q3, p3, nk3, 0.1), atol=2e-2, rtol=2e-2)

    print("KERNEL_OK")
</pallas_src>

<mosaic_0001>
module attributes {stable_mosaic.version = 11 : i64} {
  func.func @_query_prep_kernel(%arg0: i32, %arg1: memref<16x32xf32, #tpu.memory_space<vmem>>, %arg2: memref<16x32xf32, #tpu.memory_space<vmem>>, %arg3: memref<16x128xbf16, #tpu.memory_space<vmem>>, %arg4: memref<16x128xbf16, #tpu.memory_space<vmem>>, %arg5: memref<16x128xf32, #tpu.memory_space<vmem>>) attributes {dimension_semantics = [#tpu.dimension_semantics<parallel>], iteration_bounds = array<i64: 1>, scalar_prefetch = 0 : i64, scratch_operands = 0 : i64, tpu.core_type = #tpu.core_type<tc>, window_params = [{transform_indices = @transform_0, window_bounds = array<i64: 16, 32>}, {transform_indices = @transform_1, window_bounds = array<i64: 16, 32>}, {transform_indices = @transform_2, window_bounds = array<i64: 16, 128>}, {transform_indices = @transform_3, window_bounds = array<i64: 16, 128>}, {transform_indices = @transform_4, window_bounds = array<i64: 16, 128>}]} {
    %c0 = arith.constant 0 : index
    %c0_0 = arith.constant 0 : index
    %0 = vector.load %arg1[%c0, %c0_0] : memref<16x32xf32, #tpu.memory_space<vmem>>, vector<16x32xf32>
    %c0_1 = arith.constant 0 : index
    %c0_2 = arith.constant 0 : index
    %1 = vector.load %arg2[%c0_1, %c0_2] : memref<16x32xf32, #tpu.memory_space<vmem>>, vector<16x32xf32>
    %2 = arith.mulf %0, %0 : vector<16x32xf32>
    %cst = arith.constant dense<0.000000e+00> : vector<16xf32>
    %3 = vector.multi_reduction <add>, %2, %cst [1] : vector<16x32xf32> to vector<16xf32>
    %4 = vector.shape_cast %3 : vector<16xf32> to vector<16x1xf32>
    %cst_3 = arith.constant 1.000000e-24 : f32
    %5 = vector.broadcast %cst_3 : f32 to vector<16x1xf32>
    %6 = arith.maximumf %4, %5 : vector<16x1xf32>
    %7 = math.rsqrt %6 : vector<16x1xf32>
    %8 = vector.broadcast %7 : vector<16x1xf32> to vector<16x32xf32>
    %9 = arith.mulf %0, %8 : vector<16x32xf32>
    %10 = arith.mulf %1, %1 : vector<16x32xf32>
    %cst_4 = arith.constant dense<0.000000e+00> : vector<16xf32>
    %11 = vector.multi_reduction <add>, %10, %cst_4 [1] : vector<16x32xf32> to vector<16xf32>
    %12 = vector.shape_cast %11 : vector<16xf32> to vector<16x1xf32>
    %cst_5 = arith.constant 1.000000e-24 : f32
    %13 = vector.broadcast %cst_5 : f32 to vector<16x1xf32>
    %14 = arith.maximumf %12, %13 : vector<16x1xf32>
    %15 = math.rsqrt %14 : vector<16x1xf32>
    %16 = vector.broadcast %15 : vector<16x1xf32> to vector<16x32xf32>
    %17 = arith.mulf %1, %16 : vector<16x32xf32>
    %cst_6 = arith.constant 1.000000e+01 : f32
    %18 = vector.broadcast %cst_6 : f32 to vector<16x32xf32>
    %19 = arith.mulf %9, %18 : vector<16x32xf32>
    %20 = arith.truncf %19 : vector<16x32xf32> to vector<16x32xbf16>
    %21 = arith.truncf %17 : vector<16x32xf32> to vector<16x32xbf16>
    %22 = arith.extf %20 : vector<16x32xbf16> to vector<16x32xf32>
    %23 = arith.extf %21 : vector<16x32xbf16> to vector<16x32xf32>
    %24 = arith.mulf %22, %23 : vector<16x32xf32>
    %cst_7 = arith.constant dense<0.000000e+00> : vector<16xf32>
    %25 = vector.multi_reduction <add>, %24, %cst_7 [1] : vector<16x32xf32> to vector<16xf32>
    %26 = vector.shape_cast %25 : vector<16xf32> to vector<16x1xf32>
    %27 = vector.shape_cast %26 : vector<16x1xf32> to vector<16x1xf32>
    %28 = vector.broadcast %27 : vector<16x1xf32> to vector<16x128xf32>
    %c0_8 = arith.constant 0 : index
    %c0_9 = arith.constant 0 : index
    %29 = vector.load %arg5[%c0_8, %c0_9] : memref<16x128xf32, #tpu.memory_space<vmem>>, vector<16x128xf32>
    tpu.vector_store %arg5[%c0_8, %c0_9], %28 {strides = array<i32>} : memref<16x128xf32, #tpu.memory_space<vmem>>, vector<16x128xf32>,
    %c0_10 = arith.constant 0 : index
    %c0_11 = arith.constant 0 : index
    %30 = vector.load %arg3[%c0_10, %c0_11] : memref<16x128xbf16, #tpu.memory_space<vmem>>, vector<16x32xbf16>
    tpu.vector_store %arg3[%c0_10, %c0_11], %20 {strides = array<i32>} : memref<16x128xbf16, #tpu.memory_space<vmem>>, vector<16x32xbf16>,
    %cst_12 = arith.constant 0.000000e+00 : bf16
    %31 = vector.broadcast %cst_12 : bf16 to vector<16x96xbf16>
    %c0_13 = arith.constant 0 : index
    %c32 = arith.constant 32 : index
    %32 = vector.load %arg3[%c0_13, %c32] : memref<16x128xbf16, #tpu.memory_space<vmem>>, vector<16x96xbf16>
    tpu.vector_store %arg3[%c0_13, %c32], %31 {strides = array<i32>} : memref<16x128xbf16, #tpu.memory_space<vmem>>, vector<16x96xbf16>,
    %c0_14 = arith.constant 0 : index
    %c0_15 = arith.constant 0 : index
    %33 = vector.load %arg4[%c0_14, %c0_15] : memref<16x128xbf16, #tpu.memory_space<vmem>>, vector<16x32xbf16>
    tpu.vector_store %arg4[%c0_14, %c0_15], %21 {strides = array<i32>} : memref<16x128xbf16, #tpu.memory_space<vmem>>, vector<16x32xbf16>,
    %cst_16 = arith.constant 0.000000e+00 : bf16
    %34 = vector.broadcast %cst_16 : bf16 to vector<16x96xbf16>
    %c0_17 = arith.constant 0 : index
    %c32_18 = arith.constant 32 : index
    %35 = vector.load %arg4[%c0_17, %c32_18] : memref<16x128xbf16, #tpu.memory_space<vmem>>, vector<16x96xbf16>
    tpu.vector_store %arg4[%c0_17, %c32_18], %34 {strides = array<i32>} : memref<16x128xbf16, #tpu.memory_space<vmem>>, vector<16x96xbf16>,
    return
  }
  func.func @transform_0(%arg0: i32) -> (i32, i32) {
    %c0_i32 = arith.constant 0 : i32
    %c0_i32_0 = arith.constant 0 : i32
    return %arg0, %c0_i32 : i32, i32
  }
  func.func @transform_1(%arg0: i32) -> (i32, i32) {
    %c0_i32 = arith.constant 0 : i32
    %c0_i32_0 = arith.constant 0 : i32
    return %arg0, %c0_i32 : i32, i32
  }
  func.func @transform_2(%arg0: i32) -> (i32, i32) {
    %c0_i32 = arith.constant 0 : i32
    %c0_i32_0 = arith.constant 0 : i32
    return %arg0, %c0_i32 : i32, i32
  }
  func.func @transform_3(%arg0: i32) -> (i32, i32) {
    %c0_i32 = arith.constant 0 : i32
    %c0_i32_0 = arith.constant 0 : i32
    return %arg0, %c0_i32 : i32, i32
  }
  func.func @transform_4(%arg0: i32) -> (i32, i32) {
    %c0_i32 = arith.constant 0 : i32
    %c0_i32_0 = arith.constant 0 : i32
    return %arg0, %c0_i32 : i32, i32
  }
}

</mosaic_0001>

<llo_original>
// kernel: tpu_custom_call.1
$region0: #{tpu_custom_call.1}
  #allocation0 [shape = 'u32[]', space=smem, size = 0x4, offset = 0x4, fixed_abs, tag = 'smem constant byte address 0x4 - core index']
  #allocation1 [shape = 'u32[144,128]{1,0:T(1,128)}', space=vmem, size = 0x12000, scoped, tag = 'internal scratch']
  %s0 = inlined_call_operand.hbm [shape: f32[8,32], index: 0, kind: input, shape index: {}]
  %s1 = inlined_call_operand.hbm [shape: f32[8,32], index: 1, kind: input, shape index: {}]
  %s2 = inlined_call_operand.hbm [shape: bf16[16,128], index: 2, kind: output, shape index: {0}]
  %s3 = inlined_call_operand.hbm [shape: bf16[16,128], index: 3, kind: output, shape index: {1}]
  %s4 = inlined_call_operand.hbm [shape: f32[16,128], index: 4, kind: output, shape index: {2}]
  %5 = xla_tuple %s2, %s3, %s4
  %s6 = sld [smem:[#allocation0]]
  $region42: #{tpu_custom_call.1} parent=0
    _
  %s8 = ssub.s32 1, %s6
  %s9 = scalar_select 0, %s8, %s6
  $region1: #{tpu_custom_call.1} parent=0
    #allocation2 [shape = 'u8[8192]{0}', space=vmem, size = 0x2000, scoped, tag = 'input window, operand 0, single buffered']
    #allocation3 [shape = 's32[1]{0}', space=sflag, size = 0x4, scoped, tag = 'scoped memory for tpu_custom_call.1']
    #allocation4 [shape = 's32[1]{0}', space=sflag, size = 0x4, scoped, tag = 'scoped memory for tpu_custom_call.1']
    #allocation5 [shape = 'u8[8192]{0}', space=vmem, size = 0x2000, scoped, tag = 'input window, operand 1, single buffered']
    #allocation6 [shape = 's32[1]{0}', space=sflag, size = 0x4, scoped, tag = 'scoped memory for tpu_custom_call.1']
    #allocation7 [shape = 'u8[4096]{0}', space=vmem, size = 0x1000, scoped, tag = 'output window, operand 0, single buffered']
    #allocation8 [shape = 'u8[4096]{0}', space=vmem, size = 0x1000, scoped, tag = 'output window, operand 1, single buffered']
    #allocation9 [shape = 's32[1]{0}', space=sflag, size = 0x4, scoped, tag = 'scoped memory for tpu_custom_call.1']
    #allocation10 [shape = 'u8[8192]{0}', space=vmem, size = 0x2000, scoped, tag = 'output window, operand 2, single buffered']
    %10 = vsyncpa [#allocation3], 0
    %11 = vsyncpa [#allocation6], 0
    %12 = vsyncpa [#allocation4], 0
    %13 = vsyncpa [#allocation9], 0
    // Predicated region
    $region2: #{tpu_custom_call.1} parent=1 // pred_check
      _
    $region3: #{tpu_custom_call.1} parent=1 // pred_check_branch
      %15 = sbr.rel (0) target = $region5
    $region4: #{tpu_custom_call.1} parent=1 // pred_region
      %s17 = ssub.s32 256, 128
      %18 = vsyncadd [#allocation3], %s17
      %s19 = sshll.u32 [#allocation2], 4
      %s20 = int_to_ptr.vmem [resolvable:$true] %s19
      %25 = dma.hbm_to_vmem [thread:$0]  %s0, 128, %s20, [#allocation3], 128, 128, 8
    $region5: #{tpu_custom_call.1} parent=1 // pred_fallthru
      _
    // Predicated region
    $region6: #{tpu_custom_call.1} parent=1 // pred_check
      _
    $region7: #{tpu_custom_call.1} parent=1 // pred_check_branch
      %27 = sbr.rel (0) target = $region9
    $region8: #{tpu_custom_call.1} parent=1 // pred_region
      %s29 = ssub.s32 256, 128
      %30 = vsyncadd [#allocation6], %s29
      %s31 = sshll.u32 [#allocation5], 4
      %s32 = int_to_ptr.vmem [resolvable:$true] %s31
      %37 = dma.hbm_to_vmem [thread:$0]  %s1, 128, %s32, [#allocation6], 128, 128, 8
    $region9: #{tpu_custom_call.1} parent=1 // pred_fallthru
      _
    // Predicated region
    $region10: #{tpu_custom_call.1} parent=1 // pred_check
      _
    $region11: #{tpu_custom_call.1} parent=1 // pred_check_branch
      %39 = sbr.rel (0) target = $region13
    $region12: #{tpu_custom_call.1} parent=1 // pred_region
      %40 = dma.done [#allocation3], 256
    $region13: #{tpu_custom_call.1} parent=1 // pred_fallthru
      _
    // Predicated region
    $region14: #{tpu_custom_call.1} parent=1 // pred_check
      _
    $region15: #{tpu_custom_call.1} parent=1 // pred_check_branch
      %42 = sbr.rel (0) target = $region17
    $region16: #{tpu_custom_call.1} parent=1 // pred_region
      %43 = dma.done [#allocation6], 256
    $region17: #{tpu_custom_call.1} parent=1 // pred_fallthru
      _
    %v45 = vld [vmem:[#allocation2] sm:$0xff]
    %v46 = vld [vmem:[#allocation2 + $0x8] sm:$0xff]
    %v47 = vld [vmem:[#allocation5] sm:$0xff]
    %v48 = vld [vmem:[#allocation5 + $0x8] sm:$0xff]
    %v49 = vmul.f32 %v45, %v45
    %v50 = vmul.f32 %v46, %v46
    %vm51 = vcmask 261120
    %v52 = vsel %vm51, %v49, 0.0
    %53 = vadd.xlane.f32.xlu0 %v52
    %v54 = vpop.xlane.xlu0 %53
    %v55 = vsel %vm51, %v50, 0.0
    %56 = vadd.xlane.f32.xlu0 %v55
    %v57 = vpop.xlane.xlu0 %56
    %v58 = vmax.f32 %v54, 1e-24
    %v59 = vmax.f32 %v57, 1e-24
    %v60 = vrsqrt.pop %v58
    %v61 = vrsqrt.pop %v59
    %v62 = vmul.f32 %v45, %v60
    %v63 = vmul.f32 %v46, %v61
    %v64 = vmul.f32 %v47, %v47
    %v65 = vmul.f32 %v48, %v48
    %v66 = vsel %vm51, %v64, 0.0
    %67 = vadd.xlane.f32.xlu0 %v66
    %v68 = vpop.xlane.xlu0 %67
    %v69 = vsel %vm51, %v65, 0.0
    %70 = vadd.xlane.f32.xlu0 %v69
    %v71 = vpop.xlane.xlu0 %70
    %v72 = vmax.f32 %v68, 1e-24
    %v73 = vmax.f32 %v71, 1e-24
    %v74 = vrsqrt.pop %v72
    %v75 = vrsqrt.pop %v73
    %v76 = vmul.f32 %v47, %v74
    %v77 = vmul.f32 %v48, %v75
    %v78 = vmul.f32 %v62, 10.0
    %v79 = vmul.f32 %v63, 10.0
    %v80 = vpack.c.bf16 %v79, %v78
    %v81 = vpack.c.bf16 %v77, %v76
    %v82 = vunpack.c.l.bf16 %v80
    %v83 = vunpack.c.h.bf16 %v80
    %v84 = vunpack.c.l.bf16 %v81
    %v85 = vunpack.c.h.bf16 %v81
    %v86 = vmul.f32 %v82, %v84
    %v87 = vmul.f32 %v83, %v85
    %v88 = vsel %vm51, %v86, 0.0
    %89 = vadd.xlane.f32.xlu0 %v88
    %v90 = vpop.xlane.xlu0 %89
    %v91 = vsel %vm51, %v87, 0.0
    %92 = vadd.xlane.f32.xlu0 %v91
    %v93 = vpop.xlane.xlu0 %92
    %94 = vst [vmem:[#allocation10] sm:$0xff] %v90
    %95 = vst [vmem:[#allocation10 + $0x8] sm:$0xff] %v93
    %v97 = vunpack.c.l.b16 %v80
    %v98 = vunpack.c.h.b16 %v80
    %v99 = vpack.c.b16 %v97, %v97
    %v100 = vpack.c.b16 %v98, %v98
    %vm103 = vcmask 257024
    %104 = vst.msk [vmem:[#allocation7] sm:$0xf] %vm103, %v99
    %105 = vst.msk [vmem:[#allocation7 + $0x4] sm:$0xf] %vm103, %v100
    %vm106 = vcmask 1043712
    %107 = vst.msk [vmem:[#allocation7] sm:$0xf] %vm106, 0
    %108 = vst.msk [vmem:[#allocation7 + $0x4] sm:$0xf] %vm106, 0
    %v110 = vunpack.c.l.b16 %v81
    %v111 = vunpack.c.h.b16 %v81
    %v112 = vpack.c.b16 %v110, %v110
    %v113 = vpack.c.b16 %v111, %v111
    %116 = vst.msk [vmem:[#allocation8] sm:$0xf] %vm103, %v112
    %117 = vst.msk [vmem:[#allocation8 + $0x4] sm:$0xf] %vm103, %v113
    %118 = vst.msk [vmem:[#allocation8] sm:$0xf] %vm106, 0
    %119 = vst.msk [vmem:[#allocation8 + $0x4] sm:$0xf] %vm106, 0
    // Predicated region
    $region18: #{tpu_custom_call.1} parent=1 // pred_check
      _
    $region19: #{tpu_custom_call.1} parent=1 // pred_check_branch
      %121 = sbr.rel (0) target = $region21
    $region20: #{tpu_custom_call.1} parent=1 // pred_region
      %s123 = ssub.s32 128, 128
      %124 = vsyncadd [#allocation4], %s123
      %s125 = sshll.u32 [#allocation7], 4
      %s126 = int_to_ptr.vmem [resolvable:$true] %s125
      %131 = dma.vmem_to_hbm [thread:$0]  %s126, 128, %s2, [#allocation4], 64, 64, 4
    $region21: #{tpu_custom_call.1} parent=1 // pred_fallthru
      _
    // Predicated region
    $region22: #{tpu_custom_call.1} parent=1 // pred_check
      _
    $region23: #{tpu_custom_call.1} parent=1 // pred_check_branch
      %133 = sbr.rel (0) target = $region25
    $region24: #{tpu_custom_call.1} parent=1 // pred_region
      %s135 = ssub.s32 128, 128
      %136 = vsyncadd [#allocation9], %s135
      %s137 = sshll.u32 [#allocation8], 4
      %s138 = int_to_ptr.vmem [resolvable:$true] %s137
      %143 = dma.vmem_to_hbm [thread:$0]  %s138, 128, %s3, [#allocation9], 64, 64, 4
    $region25: #{tpu_custom_call.1} parent=1 // pred_fallthru
      _
    // Predicated region
    $region26: #{tpu_custom_call.1} parent=1 // pred_check
      _
    $region27: #{tpu_custom_call.1} parent=1 // pred_check_branch
      %145 = sbr.rel (0) target = $region29
    $region28: #{tpu_custom_call.1} parent=1 // pred_region
      %s147 = ssub.s32 256, 256
      %148 = vsyncadd [#allocation9], %s147
      %s149 = sshll.u32 [#allocation10], 4
      %s150 = int_to_ptr.vmem [resolvable:$true] %s149
      %155 = dma.vmem_to_hbm [thread:$0]  %s150, 256, %s4, [#allocation9], 128, 128, 8
    $region29: #{tpu_custom_call.1} parent=1 // pred_fallthru
      _
    // Predicated region
    $region30: #{tpu_custom_call.1} parent=1 // pred_check
      _
    $region31: #{tpu_custom_call.1} parent=1 // pred_check_branch
      %157 = sbr.rel (0) target = $region33
    $region32: #{tpu_custom_call.1} parent=1 // pred_region
      %158 = dma.done [#allocation4], 128
    $region33: #{tpu_custom_call.1} parent=1 // pred_fallthru
      _
    // Predicated region
    $region34: #{tpu_custom_call.1} parent=1 // pred_check
      _
    $region35: #{tpu_custom_call.1} parent=1 // pred_check_branch
      %160 = sbr.rel (0) target = $region37
    $region36: #{tpu_custom_call.1} parent=1 // pred_region
      %161 = dma.done [#allocation9], 128
    $region37: #{tpu_custom_call.1} parent=1 // pred_fallthru
      _
    // Predicated region
    $region38: #{tpu_custom_call.1} parent=1 // pred_check
      _
    $region39: #{tpu_custom_call.1} parent=1 // pred_check_branch
      %163 = sbr.rel (0) target = $region41
    $region40: #{tpu_custom_call.1} parent=1 // pred_region
      %164 = dma.done [#allocation9], 256
    $region41: #{tpu_custom_call.1} parent=1 // pred_fallthru
      _
    %165 = vsyncpa [#allocation3], 1
    %166 = vsyncpa [#allocation6], 1
    %167 = vsyncpa [#allocation4], 1
    %168 = vsyncpa [#allocation9], 1

</llo_original>
